<compile_context>
chip_gen: v5e
topology: v5e:2x2
jax: 0.10.0
libtpu: 0.0.40
codegen_flags: <defaults>
</compile_context>

<pallas_src>
import math

import jax
import jax.numpy as jnp
import numpy as np
from jax.experimental import pallas as pl
from jax.experimental.pallas import tpu as pltpu


def _ensemble_kernel(x_ref, s_ref, o_ref):
    # x_ref: (tr, W)  lane-dense slab; each slab row packs P = W // n original rows.
    # s_ref: (W, P)   block-diagonal weight matrix (constant index_map -> stays
    #                 resident in VMEM across grid steps).
    # o_ref: (tr, P)  packed outputs; row-major flatten == original row order.
    #
    # Partial last grid block (Mp % tr != 0): OOB input rows read garbage, but
    # every output row depends only on its own packed input row, so garbage
    # lands only in OOB output rows whose writes Pallas drops.  Do not introduce
    # cross-row dependence here.
    o_ref[...] = jnp.dot(
        x_ref[...], s_ref[...], preferred_element_type=jnp.float32
    )


def _round_up(x: int, m: int) -> int:
    return ((x + m - 1) // m) * m


def _xla_forward(inputs, w, class_num, dtype=jnp.float32):
    # Fused multiply+reduce: one pass over the data, exact f32 (no MXU).
    x = inputs.astype(dtype) * w.reshape(-1).astype(dtype)
    return jnp.sum(x, axis=-1).reshape(-1, class_num)


def ensemble_forward(
    inputs,
    w,
    class_num,
    *,
    target_tile_bytes=16 * 1024 * 1024,
    vmem_budget_bytes=40 * 1024 * 1024,
    min_grid_steps=4,
    min_pallas_bytes=2 * 1024 * 1024,
):
    """inputs: (B, class_num, n), w: (n, 1) -> (B, class_num) float32."""
    B, C, N = inputs.shape
    assert C == class_num
    dtype = jnp.float32
    M = B * C

    # Packing factor: W = P*N is always a multiple of 128 (lane-dense input).
    # Raise P towards 32 when N allows (denser output stores, less padded
    # out-buffer VMEM) while keeping MXU intensity P/2 flop/byte comfortably
    # under the f32-matmul : HBM roofline knee on all generations.  For n with
    # gcd(n, 128) <= 2 (e.g. odd n), P0 itself is 64-128; that can approach the
    # v5e knee but remains HBM-bound on v6e/v7x.
    P0 = 128 // math.gcd(N, 128)
    P = P0 * max(1, 32 // P0)
    W = P * N

    input_bytes = M * N * 4
    if (input_bytes < min_pallas_bytes) or (M % P != 0) or (M // P < 8):
        # Small problems: pallas_call launch + glue dominate; kernel cannot win
        # below roughly one tile of data.
        # Ragged M: the packed (M/P, W) view needs M % P == 0; padding (or a
        # materialized prefix slice) would add a full extra HBM copy (~3x
        # traffic), so the single-pass fused XLA path is strictly cheaper.
        return _xla_forward(inputs, w, class_num, dtype)

    x2d = inputs.reshape(M, N).astype(dtype)
    w1d = w.reshape(N).astype(dtype)
    Mp = M // P
    xp = x2d.reshape(Mp, W)  # pure row-major view, no copy, no pad

    # Block-diagonal selection matrix with the ensemble weights folded in:
    #   S[p*N + k, p] = w[k]
    S = (jnp.eye(P, dtype=dtype)[:, None, :] * w1d[None, :, None]).reshape(W, P)

    # Row-tile size: as large as the VMEM buffer budget / tile target allow,
    # but keep >= min_grid_steps grid steps when there is enough data so
    # input-prefetch / compute / output-writeback overlap (and both TCs on
    # dual-core parts get >= 2 steps each).
    out_lanes = _round_up(P, 128)                      # out rows pad to 128 lanes
    per_row_bytes = 2 * W * 4 + 2 * out_lanes * 4      # dbl-buffered in + out
    s_bytes = 2 * _round_up(W, 8) * out_lanes * 4      # resident S (dbl-buffered)
    tr_budget = max(8, (vmem_budget_bytes - s_bytes) // per_row_bytes // 8 * 8)
    tr_target = max(8, target_tile_bytes // (W * 4) // 8 * 8)
    tr_steps = max(8, _round_up(pl.cdiv(Mp, min_grid_steps), 8))
    tr = min(tr_budget, tr_target, tr_steps)
    grid = pl.cdiv(Mp, tr)

    out_packed = pl.pallas_call(
        _ensemble_kernel,
        out_shape=jax.ShapeDtypeStruct((Mp, P), dtype),
        grid_spec=pltpu.PrefetchScalarGridSpec(
            num_scalar_prefetch=0,
            grid=(grid,),
            in_specs=[
                pl.BlockSpec((tr, W), lambda i: (i, 0)),
                pl.BlockSpec((W, P), lambda i: (0, 0)),
            ],
            out_specs=pl.BlockSpec((tr, P), lambda i: (i, 0)),
        ),
        compiler_params=pltpu.CompilerParams(
            # Single parallel axis: shards grid steps across TensorCores on
            # dual-TC parts (verify with xprof; switch to CORE_PARALLEL only if
            # profiling shows it does not shard).
            dimension_semantics=("parallel",),
            # Explicit scoped-VMEM limit: covers the ~40 MiB buffer budget on
            # every generation (v5e default is only 16 MiB) while staying under
            # the ~48 MiB guideline for v7x's 64 MiB physical VMEM.
            vmem_limit_bytes=48 * 1024 * 1024,
        ),
    )(xp, S)

    # torch.sum(x, 2) on a size-1 dim is a squeeze; row-major reshape of the
    # packed result is exactly the original row order (pure glue, Mp*P == M).
    return out_packed.reshape(-1, class_num)


if __name__ == "__main__":
    key = jax.random.PRNGKey(0)
    k1, k2, k3, k4, k5, k6 = jax.random.split(key, 6)

    def reference(inputs, w, class_num):
        # Exact f32 multiply+sum on the VPU (independent of the MXU kernel);
        # mirrors torch.matmul + sum + reshape semantics.
        x = inputs.astype(jnp.float32) * w.reshape(-1).astype(jnp.float32)
        return jnp.sum(x, axis=-1).reshape(-1, class_num)

    # Case 1: small aligned shape; Pallas path forced (single grid step).
    B, class_num, n = 8, 32, 8
    inputs = jax.random.normal(k1, (B, class_num, n), dtype=jnp.float32)
    # torch.nn.init.uniform_(w, 0, 1) on shape (n, 1), done deterministically.
    w = jax.random.uniform(k2, (n, 1), dtype=jnp.float32, minval=0.0, maxval=1.0)
    out = jax.block_until_ready(
        ensemble_forward(inputs, w, class_num, min_pallas_bytes=0))
    np.testing.assert_allclose(
        np.asarray(out), np.asarray(reference(inputs, w, class_num)),
        rtol=1e-5, atol=1e-5)
    assert out.shape == (B, class_num)

    # Case 2: aligned shape exercising a multi-step grid with a partial last
    # block (Mp = 80, tr = 24 -> grid = 4), Pallas path forced.
    B2, class_num2, n2 = 64, 40, 8
    inputs2 = jax.random.normal(k3, (B2, class_num2, n2), dtype=jnp.float32)
    w2 = jax.random.uniform(k4, (n2, 1), dtype=jnp.float32, minval=0.0, maxval=1.0)
    out2 = jax.block_until_ready(
        ensemble_forward(inputs2, w2, class_num2, min_pallas_bytes=0))
    np.testing.assert_allclose(
        np.asarray(out2), np.asarray(reference(inputs2, w2, class_num2)),
        rtol=1e-5, atol=1e-5)
    assert out2.shape == (B2, class_num2)

    # Case 3: awkward/ragged shape -> single-pass fused XLA fallback
    # (replaces the old jnp.pad full-array copy).
    B3, class_num3, n3 = 5, 33, 12
    inputs3 = jax.random.normal(k5, (B3, class_num3, n3), dtype=jnp.float32)
    w3 = jax.random.uniform(k6, (n3, 1), dtype=jnp.float32, minval=0.0, maxval=1.0)
    out3 = jax.block_until_ready(ensemble_forward(inputs3, w3, class_num3))
    np.testing.assert_allclose(
        np.asarray(out3), np.asarray(reference(inputs3, w3, class_num3)),
        rtol=1e-5, atol=1e-5)
    assert out3.shape == (B3, class_num3)

    print("KERNEL_OK")
</pallas_src>

<mosaic_0001>
module attributes {stable_mosaic.version = 11 : i64} {
  func.func @_ensemble_kernel(%arg0: i32, %arg1: memref<8x256xf32, #tpu.memory_space<vmem>>, %arg2: memref<256x32xf32, #tpu.memory_space<vmem>>, %arg3: memref<8x32xf32, #tpu.memory_space<vmem>>) attributes {dimension_semantics = [#tpu.dimension_semantics<parallel>], iteration_bounds = array<i64: 1>, scalar_prefetch = 0 : i64, scratch_operands = 0 : i64, tpu.core_type = #tpu.core_type<tc>, window_params = [{transform_indices = @transform_0, window_bounds = array<i64: 8, 256>}, {pipeline_mode = #tpu.pipeline_mode<synchronous>, transform_indices = @transform_1, window_bounds = array<i64: 256, 32>}, {transform_indices = @transform_2, window_bounds = array<i64: 8, 32>}]} {
    %c0 = arith.constant 0 : index
    %c0_0 = arith.constant 0 : index
    %0 = vector.load %arg1[%c0, %c0_0] : memref<8x256xf32, #tpu.memory_space<vmem>>, vector<8x256xf32>
    %c0_1 = arith.constant 0 : index
    %c0_2 = arith.constant 0 : index
    %1 = vector.load %arg2[%c0_1, %c0_2] : memref<256x32xf32, #tpu.memory_space<vmem>>, vector<256x32xf32>
    %cst = arith.constant dense<0.000000e+00> : vector<8x32xf32>
    %2 = tpu.matmul %0, %1, %cst {dimension_numbers = #tpu.dot_dimension_numbers<[1], [0], [0], [1], [0, 0, 1, 1], [], []>} : vector<8x256xf32>, vector<256x32xf32>, vector<8x32xf32> -> vector<8x32xf32>
    %c0_3 = arith.constant 0 : index
    %c0_4 = arith.constant 0 : index
    %3 = vector.load %arg3[%c0_3, %c0_4] : memref<8x32xf32, #tpu.memory_space<vmem>>, vector<8x32xf32>
    tpu.vector_store %arg3[%c0_3, %c0_4], %2 {strides = array<i32>} : memref<8x32xf32, #tpu.memory_space<vmem>>, vector<8x32xf32>,
    return
  }
  func.func @transform_0(%arg0: i32) -> (i32, i32) {
    %c0_i32 = arith.constant 0 : i32
    %c0_i32_0 = arith.constant 0 : i32
    return %arg0, %c0_i32 : i32, i32
  }
  func.func @transform_1(%arg0: i32) -> (i32, i32) {
    %c0_i32 = arith.constant 0 : i32
    %c0_i32_0 = arith.constant 0 : i32
    %c0_i32_1 = arith.constant 0 : i32
    return %c0_i32, %c0_i32_0 : i32, i32
  }
  func.func @transform_2(%arg0: i32) -> (i32, i32) {
    %c0_i32 = arith.constant 0 : i32
    %c0_i32_0 = arith.constant 0 : i32
    return %arg0, %c0_i32 : i32, i32
  }
}

</mosaic_0001>

<llo_original>
// kernel: tpu_custom_call.1
$region0: #{tpu_custom_call.1}
  #allocation0 [shape = 'u32[]', space=smem, size = 0x4, offset = 0x4, fixed_abs, tag = 'smem constant byte address 0x4 - core index']
  #allocation1 [shape = 'u32[72,128]{1,0:T(1,128)}', space=vmem, size = 0x9000, scoped, tag = 'internal scratch']
  %s0 = inlined_call_operand.vmem [shape: f32[8,256], index: 0, kind: input, shape index: {}]
  %s1 = inlined_call_operand.vmem [shape: f32[256,32], index: 1, kind: input, shape index: {}]
  %s2 = inlined_call_operand.hbm [shape: f32[8,32], index: 2, kind: output, shape index: {}]
  %s3 = sld [smem:[#allocation0]]
  $region18: #{tpu_custom_call.1} parent=0
    _
  %s5 = ssub.s32 1, %s3
  %s6 = scalar_select 0, %s5, %s3
  $region1: #{tpu_custom_call.1} parent=0
    #allocation2 [shape = 'u8[4096]{0}', space=vmem, size = 0x1000, scoped, tag = 'output window, operand 0, single buffered']
    #allocation3 [shape = 's32[1]{0}', space=sflag, size = 0x4, scoped, tag = 'scoped memory for tpu_custom_call.1']
    %7 = vsyncpa [#allocation3], 0
    // Predicated region
    $region2: #{tpu_custom_call.1} parent=1 // pred_check
      _
    $region3: #{tpu_custom_call.1} parent=1 // pred_check_branch
      %9 = sbr.rel (0) target = $region5
    $region4: #{tpu_custom_call.1} parent=1 // pred_region
      _
    $region5: #{tpu_custom_call.1} parent=1 // pred_fallthru
      _
    // Predicated region
    $region6: #{tpu_custom_call.1} parent=1 // pred_check
      _
    $region7: #{tpu_custom_call.1} parent=1 // pred_check_branch
      %11 = sbr.rel (0) target = $region9
    $region8: #{tpu_custom_call.1} parent=1 // pred_region
      _
    $region9: #{tpu_custom_call.1} parent=1 // pred_fallthru
      _
    %v12 = vld [vmem:[%s0] sm:$0xff]
    %v13 = vld [vmem:[%s0 + $0x8] sm:$0xff]
    %v14 = vld [vmem:[%s1] sm:$0xff]
    %v15 = vld [vmem:[%s1 + $0x8] sm:$0xff]
    %v16 = vld [vmem:[%s1 + $0x10] sm:$0xff]
    %v17 = vld [vmem:[%s1 + $0x18] sm:$0xff]
    %v18 = vld [vmem:[%s1 + $0x20] sm:$0xff]
    %v19 = vld [vmem:[%s1 + $0x28] sm:$0xff]
    %v20 = vld [vmem:[%s1 + $0x30] sm:$0xff]
    %v21 = vld [vmem:[%s1 + $0x38] sm:$0xff]
    %v22 = vld [vmem:[%s1 + $0x40] sm:$0xff]
    %v23 = vld [vmem:[%s1 + $0x48] sm:$0xff]
    %v24 = vld [vmem:[%s1 + $0x50] sm:$0xff]
    %v25 = vld [vmem:[%s1 + $0x58] sm:$0xff]
    %v26 = vld [vmem:[%s1 + $0x60] sm:$0xff]
    %v27 = vld [vmem:[%s1 + $0x68] sm:$0xff]
    %v28 = vld [vmem:[%s1 + $0x70] sm:$0xff]
    %v29 = vld [vmem:[%s1 + $0x78] sm:$0xff]
    %v30 = vld [vmem:[%s1 + $0x80] sm:$0xff]
    %v31 = vld [vmem:[%s1 + $0x88] sm:$0xff]
    %v32 = vld [vmem:[%s1 + $0x90] sm:$0xff]
    %v33 = vld [vmem:[%s1 + $0x98] sm:$0xff]
    %v34 = vld [vmem:[%s1 + $0xa0] sm:$0xff]
    %v35 = vld [vmem:[%s1 + $0xa8] sm:$0xff]
    %v36 = vld [vmem:[%s1 + $0xb0] sm:$0xff]
    %v37 = vld [vmem:[%s1 + $0xb8] sm:$0xff]
    %v38 = vld [vmem:[%s1 + $0xc0] sm:$0xff]
    %v39 = vld [vmem:[%s1 + $0xc8] sm:$0xff]
    %v40 = vld [vmem:[%s1 + $0xd0] sm:$0xff]
    %v41 = vld [vmem:[%s1 + $0xd8] sm:$0xff]
    %v42 = vld [vmem:[%s1 + $0xe0] sm:$0xff]
    %v43 = vld [vmem:[%s1 + $0xe8] sm:$0xff]
    %v44 = vld [vmem:[%s1 + $0xf0] sm:$0xff]
    %v45 = vld [vmem:[%s1 + $0xf8] sm:$0xff]
    %46 = vmatpush.msra.mxu0 %v29
    %47 = vmatpush.msra.mxu0 %v28
    %48 = vmatpush.msra.mxu0 %v27
    %49 = vmatpush.msra.mxu0 %v26
    %50 = vmatpush.msra.mxu0 %v25
    %51 = vmatpush.msra.mxu0 %v24
    %52 = vmatpush.msra.mxu0 %v23
    %53 = vmatpush.msra.mxu0 %v22
    %54 = vmatpush.msra.mxu0 %v21
    %55 = vmatpush.msra.mxu0 %v20
    %56 = vmatpush.msra.mxu0 %v19
    %57 = vmatpush.msra.mxu0 %v18
    %58 = vmatpush.msra.mxu0 %v17
    %59 = vmatpush.msra.mxu0 %v16
    %60 = vmatpush.msra.mxu0 %v15
    %61 = vmatpush.msra.mxu0 %v14
    %62 = vmatmul.f32.gmra.mxu0 %v12
    %v63 = vpop.f32.mrf.mxu0
    %v64 = vadd.f32 0.0, %v63
    %65 = vdwg.mxu0
    %66 = vmatpush.msra.mxu0 %v45
    %67 = vmatpush.msra.mxu0 %v44
    %68 = vmatpush.msra.mxu0 %v43
    %69 = vmatpush.msra.mxu0 %v42
    %70 = vmatpush.msra.mxu0 %v41
    %71 = vmatpush.msra.mxu0 %v40
    %72 = vmatpush.msra.mxu0 %v39
    %73 = vmatpush.msra.mxu0 %v38
    %74 = vmatpush.msra.mxu0 %v37
    %75 = vmatpush.msra.mxu0 %v36
    %76 = vmatpush.msra.mxu0 %v35
    %77 = vmatpush.msra.mxu0 %v34
    %78 = vmatpush.msra.mxu0 %v33
    %79 = vmatpush.msra.mxu0 %v32
    %80 = vmatpush.msra.mxu0 %v31
    %81 = vmatpush.msra.mxu0 %v30
    %82 = vmatmul.f32.gmra.mxu0 %v13
    %v83 = vpop.f32.mrf.mxu0
    %v84 = vadd.f32 %v64, %v83
    %85 = vdwg.mxu0
    %vm86 = vcmask 261120
    %87 = vst.msk [vmem:[#allocation2] sm:$0xff] %vm86, %v84
    // Predicated region
    $region10: #{tpu_custom_call.1} parent=1 // pred_check
      _
    $region11: #{tpu_custom_call.1} parent=1 // pred_check_branch
      %89 = sbr.rel (0) target = $region13
    $region12: #{tpu_custom_call.1} parent=1 // pred_region
      %91 = vsyncadd [#allocation3], 0
      %s93 = sshll.u32 [#allocation2], 4
      %s94 = int_to_ptr.vmem [resolvable:$true] %s93
      %s95 = sshll.u32 %s2, 4
      %s96 = int_to_ptr.hbm [resolvable:$true] %s95
      %98 = dma.vmem_to_hbm [thread:$0]  %s94, 128, %s96, [#allocation3]
    $region13: #{tpu_custom_call.1} parent=1 // pred_fallthru
      _
    // Predicated region
    $region14: #{tpu_custom_call.1} parent=1 // pred_check
      _
    $region15: #{tpu_custom_call.1} parent=1 // pred_check_branch
      %100 = sbr.rel (0) target = $region17
    $region16: #{tpu_custom_call.1} parent=1 // pred_region
      %102 = dma.done [#allocation3], 128
    $region17: #{tpu_custom_call.1} parent=1 // pred_fallthru
      _
    %103 = vsyncpa [#allocation3], 1

</llo_original>
